<compile_context>
chip_gen: v6e
topology: v6e:2x2x1
jax: 0.10.0
libtpu: 0.0.40
codegen_flags: <defaults>
</compile_context>

<pallas_src>
import functools

import jax
import jax.numpy as jnp
from jax.experimental import pallas as pl
from jax.experimental.pallas import tpu as pltpu

MAX_B_TILE = 8192          # rows per grid step cap (keeps double-buffered VMEM ~16 MiB)
VMEM_LIMIT_BYTES = 40 * 1024 * 1024  # above v5e's 16 MiB / v6e-v7x 32 MiB scoped defaults


def deepqnn_kernel(x_ref, w_ref, b_ref, o_ref):
    # x_ref: (B_TILE, 6) natural row-major tile of the input.
    # w_ref: (6, 2) folded weight (VMEM-resident across the whole grid).
    # b_ref: (1, 2) folded bias.
    # o_ref: (B_TILE, 2) output tile, written once, contiguous in HBM.
    x = x_ref[...]
    q = jnp.dot(x, w_ref[...], preferred_element_type=jnp.float32) + b_ref[...]
    o_ref[...] = jax.nn.sigmoid(q)


def fold_params(params):
    """Fold Linear(6,6)->Linear(6,6)->Linear(6,2) (no intermediate nonlinearity)
    into a single equivalent (6,2) weight and (1,2) bias.  Weights are stored
    pre-transposed as (in_features, out_features); biases as (1, out_features)."""
    w1, b1 = params["w1"], params["b1"]
    w2, b2 = params["w2"], params["b2"]
    w3, b3 = params["w3"], params["b3"]
    w = w1 @ w2 @ w3                     # (6, 2)
    b = (b1 @ w2 + b2) @ w3 + b3         # (1, 2)
    return w, b


def choose_b_tile(batch):
    """Batch-tile: ~batch/8 rows per step (>= 8 grid steps for megacore + pipelining),
    rounded up to a multiple of 128, capped so VMEM stays well inside every
    generation's limit (the 6- and 2-wide blocks pad to 128 lanes in VMEM)."""
    target = -(-batch // 8)              # cdiv(batch, 8)
    tile = ((target + 127) // 128) * 128
    return max(128, min(MAX_B_TILE, tile))


def deepqnn_forward(x, params):
    """x: (batch, 6) float32.  Returns (batch, 2) = sigmoid(L3(L2(L1(x))))."""
    batch = x.shape[0]
    w, b = fold_params(params)           # tiny (6,6)x(6,6)x(6,2) fold, done once per call

    b_tile = choose_b_tile(batch)
    n_tiles = pl.cdiv(batch, b_tile)     # ragged trailing tile handled by Pallas

    out = pl.pallas_call(
        deepqnn_kernel,
        out_shape=jax.ShapeDtypeStruct((batch, 2), jnp.float32),
        grid=(n_tiles,),
        in_specs=[
            pl.BlockSpec((b_tile, 6), lambda i: (i, 0)),  # x tile: contiguous HBM rows
            pl.BlockSpec((6, 2), lambda i: (0, 0)),       # folded W: VMEM-resident
            pl.BlockSpec((1, 2), lambda i: (0, 0)),       # folded b: VMEM-resident
        ],
        out_specs=pl.BlockSpec((b_tile, 2), lambda i: (i, 0)),
        compiler_params=pltpu.CompilerParams(
            dimension_semantics=("parallel",),            # shard batch tiles across TCs
            vmem_limit_bytes=VMEM_LIMIT_BYTES,
        ),
    )(x, w, b)

    return out                            # (batch, 2), no wrapper-side layout passes


def init_params(key):
    """Deterministic init mirroring PyTorch nn.Linear default:
    U(-1/sqrt(fan_in), 1/sqrt(fan_in)) for weights and biases."""
    dims = [(6, 6), (6, 6), (6, 2)]      # (in_features, out_features) per layer
    params = {}
    keys = jax.random.split(key, 2 * len(dims))
    for i, (fan_in, fan_out) in enumerate(dims):
        bound = 1.0 / (fan_in ** 0.5)
        params[f"w{i+1}"] = jax.random.uniform(
            keys[2 * i], (fan_in, fan_out), jnp.float32, -bound, bound
        )
        params[f"b{i+1}"] = jax.random.uniform(
            keys[2 * i + 1], (1, fan_out), jnp.float32, -bound, bound
        )
    return params


def reference_forward(x, params):
    # Unfolded three-layer path (matches the PyTorch module exactly).
    h1 = x @ params["w1"] + params["b1"]
    h2 = h1 @ params["w2"] + params["b2"]
    q = h2 @ params["w3"] + params["b3"]
    return jax.nn.sigmoid(q)


if __name__ == "__main__":
    key = jax.random.PRNGKey(0)
    k_params, k_x = jax.random.split(key)
    params = init_params(k_params)

    batch = 200  # not a tile multiple: exercises the ragged trailing block path
    x = jax.random.normal(k_x, (batch, 6), dtype=jnp.float32)

    out = deepqnn_forward(x, params)
    out = jax.block_until_ready(out)

    ref = reference_forward(x, params)
    assert out.shape == (batch, 2)
    assert jnp.allclose(out, ref, atol=1e-5, rtol=1e-4)

    print("KERNEL_OK")
</pallas_src>

<mosaic_0001>
module attributes {stable_mosaic.version = 11 : i64} {
  func.func @deepqnn_kernel(%arg0: i32, %arg1: memref<128x6xf32, #tpu.memory_space<vmem>>, %arg2: memref<6x2xf32, #tpu.memory_space<vmem>>, %arg3: memref<1x2xf32, #tpu.memory_space<vmem>>, %arg4: memref<128x2xf32, #tpu.memory_space<vmem>>) attributes {dimension_semantics = [#tpu.dimension_semantics<parallel>], iteration_bounds = array<i64: 2>, scalar_prefetch = 0 : i64, scratch_operands = 0 : i64, tpu.core_type = #tpu.core_type<tc>, window_params = [{transform_indices = @transform_0, window_bounds = array<i64: 128, 6>}, {pipeline_mode = #tpu.pipeline_mode<synchronous>, transform_indices = @transform_1, window_bounds = array<i64: 6, 2>}, {pipeline_mode = #tpu.pipeline_mode<synchronous>, transform_indices = @transform_2, window_bounds = array<i64: 1, 2>}, {transform_indices = @transform_3, window_bounds = array<i64: 128, 2>}]} {
    %c0 = arith.constant 0 : index
    %c0_0 = arith.constant 0 : index
    %0 = vector.load %arg1[%c0, %c0_0] : memref<128x6xf32, #tpu.memory_space<vmem>>, vector<128x6xf32>
    %c0_1 = arith.constant 0 : index
    %c0_2 = arith.constant 0 : index
    %1 = vector.load %arg2[%c0_1, %c0_2] : memref<6x2xf32, #tpu.memory_space<vmem>>, vector<6x2xf32>
    %cst = arith.constant dense<0.000000e+00> : vector<128x2xf32>
    %2 = tpu.matmul %0, %1, %cst {dimension_numbers = #tpu.dot_dimension_numbers<[1], [0], [0], [1], [0, 0, 1, 1], [], []>} : vector<128x6xf32>, vector<6x2xf32>, vector<128x2xf32> -> vector<128x2xf32>
    %c0_3 = arith.constant 0 : index
    %c0_4 = arith.constant 0 : index
    %3 = vector.load %arg3[%c0_3, %c0_4] : memref<1x2xf32, #tpu.memory_space<vmem>>, vector<1x2xf32>
    %4 = vector.broadcast %3 : vector<1x2xf32> to vector<128x2xf32>
    %5 = arith.addf %2, %4 : vector<128x2xf32>
    %6 = arith.negf %5 : vector<128x2xf32>
    %7 = math.exp %6 : vector<128x2xf32>
    %cst_5 = arith.constant 1.000000e+00 : f32
    %8 = vector.broadcast %cst_5 : f32 to vector<128x2xf32>
    %9 = arith.addf %8, %7 : vector<128x2xf32>
    %10 = arith.divf %8, %9 : vector<128x2xf32>
    %c0_6 = arith.constant 0 : index
    %c0_7 = arith.constant 0 : index
    %11 = vector.load %arg4[%c0_6, %c0_7] : memref<128x2xf32, #tpu.memory_space<vmem>>, vector<128x2xf32>
    tpu.vector_store %arg4[%c0_6, %c0_7], %10 {strides = array<i32>} : memref<128x2xf32, #tpu.memory_space<vmem>>, vector<128x2xf32>,
    return
  }
  func.func @transform_0(%arg0: i32) -> (i32, i32) {
    %c0_i32 = arith.constant 0 : i32
    %c0_i32_0 = arith.constant 0 : i32
    return %arg0, %c0_i32 : i32, i32
  }
  func.func @transform_1(%arg0: i32) -> (i32, i32) {
    %c0_i32 = arith.constant 0 : i32
    %c0_i32_0 = arith.constant 0 : i32
    %c0_i32_1 = arith.constant 0 : i32
    return %c0_i32, %c0_i32_0 : i32, i32
  }
  func.func @transform_2(%arg0: i32) -> (i32, i32) {
    %c0_i32 = arith.constant 0 : i32
    %c0_i32_0 = arith.constant 0 : i32
    %c0_i32_1 = arith.constant 0 : i32
    return %c0_i32, %c0_i32_0 : i32, i32
  }
  func.func @transform_3(%arg0: i32) -> (i32, i32) {
    %c0_i32 = arith.constant 0 : i32
    %c0_i32_0 = arith.constant 0 : i32
    return %arg0, %c0_i32 : i32, i32
  }
}

</mosaic_0001>

<llo_original>
// kernel: tpu_custom_call.1
$region0: #{tpu_custom_call.1}
  #allocation0 [shape = 'u32[]', space=smem, size = 0x4, offset = 0x4, fixed_abs, tag = 'smem constant byte address 0x4 - core index']
  #allocation1 [shape = 'u32[144,128]{1,0:T(1,128)}', space=vmem, size = 0x12000, scoped, tag = 'internal scratch']
  %s0 = inlined_call_operand.vmem [shape: f32[200,6], index: 0, kind: input, shape index: {}]
  %s1 = inlined_call_operand.vmem [shape: f32[6,2], index: 1, kind: input, shape index: {}]
  %s2 = inlined_call_operand.vmem [shape: f32[1,2], index: 2, kind: input, shape index: {}]
  %s3 = inlined_call_operand.vmem [shape: f32[200,2], index: 3, kind: output, shape index: {}]
  %s4 = sld [smem:[#allocation0]]
  $region93: #{tpu_custom_call.1} parent=0
    _
  %s6 = ssub.s32 1, %s4
  %s7 = scalar_select 0, %s6, %s4
  $region1: #{tpu_custom_call.1} parent=0
    #allocation2 [shape = 'u8[131072]{0}', space=vmem, size = 0x20000, scoped, tag = 'output window, operand 0']
    loop: start=0, step=1, limit=4
    $region2: #{tpu_custom_call.1} parent=1 // loop_pre_header
      _
    $region3: #{tpu_custom_call.1} parent=1 // loop_header
      %s9 = sphi 0, %s13
      %p10 = scmp.ge.s32.totalorder %s9, 4
      %s19 = sphi 0, %s21
      %s22 = sphi 0, %s19
      %s23 = sphi 0, %s22
      %s39 = sphi 0, %s23
      %s43 = sphi 0, %s43
      %s45 = sphi 0, %s43
      %s46 = sphi 0, %s45
      %s60 = sphi 0, %s46
      %s64 = sphi 0, %s64
      %s66 = sphi 0, %s64
      %s67 = sphi 0, %s66
      %s81 = sphi 0, %s67
      %s87 = sphi 0, %s89
      %s90 = sphi 0, %s87
      %s91 = sphi 0, %s90
      %s107 = sphi 0, %s91
    $region4: #{tpu_custom_call.1} parent=1 // loop_header_branch
      %12 = sbr.rel (%p10) target = $region8
    $region5: #{tpu_custom_call.1} parent=1 // loop_body
      %s14 = ssub.s32 %s9, 1
      %s15 = ssub.s32 %s9, 2
      %s16 = sadd.s32 %s9, 1
      %s17 = ssub.s32 %s9, %s16
      %p18 = scmp.eq.s32.totalorder %s17, 0
      %s20 = sadd.s32 %s19, 1
      %s21 = scalar_select %p18, %s19, %s20
      %p24 = pneg %p18
      %p25 = scmp.eq.s32.totalorder %s9, 1
      %p26 = por %p24, %p25
      %p27 = scmp.ne.s32.totalorder %s19, %s22
      %p28 = scmp.eq.s32.totalorder %s9, 0
      %p29 = por %p27, %p28
      %p30 = scmp.ne.s32.totalorder %s19, %s22
      %p31 = scmp.eq.s32.totalorder %s14, 1
      %p32 = por %p30, %p31
      %p33 = scmp.ne.s32.totalorder %s22, %s23
      %p34 = scmp.eq.s32.totalorder %s14, 0
      %p35 = por %p33, %p34
      %p36 = scmp.ne.s32.totalorder %s22, %s23
      %p37 = scmp.eq.s32.totalorder %s15, 1
      %p38 = por %p36, %p37
      %p40 = scmp.ne.s32.totalorder %s23, %s39
      %p41 = scmp.eq.s32.totalorder %s15, 0
      %p42 = por %p40, %p41
      %s44 = sadd.s32 %s43, 1
      %p47 = scmp.eq.s32.totalorder %s9, 1
      %p48 = scmp.ne.s32.totalorder %s43, %s45
      %p49 = scmp.eq.s32.totalorder %s9, 0
      %p50 = por %p48, %p49
      %p51 = scmp.ne.s32.totalorder %s43, %s45
      %p52 = scmp.eq.s32.totalorder %s14, 1
      %p53 = por %p51, %p52
      %p54 = scmp.ne.s32.totalorder %s45, %s46
      %p55 = scmp.eq.s32.totalorder %s14, 0
      %p56 = por %p54, %p55
      %p57 = scmp.ne.s32.totalorder %s45, %s46
      %p58 = scmp.eq.s32.totalorder %s15, 1
      %p59 = por %p57, %p58
      %p61 = scmp.ne.s32.totalorder %s46, %s60
      %p62 = scmp.eq.s32.totalorder %s15, 0
      %p63 = por %p61, %p62
      %s65 = sadd.s32 %s64, 1
      %p68 = scmp.eq.s32.totalorder %s9, 1
      %p69 = scmp.ne.s32.totalorder %s64, %s66
      %p70 = scmp.eq.s32.totalorder %s9, 0
      %p71 = por %p69, %p70
      %p72 = scmp.ne.s32.totalorder %s64, %s66
      %p73 = scmp.eq.s32.totalorder %s14, 1
      %p74 = por %p72, %p73
      %p75 = scmp.ne.s32.totalorder %s66, %s67
      %p76 = scmp.eq.s32.totalorder %s14, 0
      %p77 = por %p75, %p76
      %p78 = scmp.ne.s32.totalorder %s66, %s67
      %p79 = scmp.eq.s32.totalorder %s15, 1
      %p80 = por %p78, %p79
      %p82 = scmp.ne.s32.totalorder %s67, %s81
      %p83 = scmp.eq.s32.totalorder %s15, 0
      %p84 = por %p82, %p83
      %s85 = ssub.s32 %s9, %s16
      %p86 = scmp.eq.s32.totalorder %s85, 0
      %s88 = sadd.s32 %s87, 1
      %s89 = scalar_select %p86, %s87, %s88
      %p92 = pneg %p86
      %p93 = scmp.eq.s32.totalorder %s9, 1
      %p94 = por %p92, %p93
      %p95 = scmp.ne.s32.totalorder %s87, %s90
      %p96 = scmp.eq.s32.totalorder %s9, 0
      %p97 = por %p95, %p96
      %p98 = scmp.ne.s32.totalorder %s87, %s90
      %p99 = scmp.eq.s32.totalorder %s14, 1
      %p100 = por %p98, %p99
      %p101 = scmp.ne.s32.totalorder %s90, %s91
      %p102 = scmp.eq.s32.totalorder %s14, 0
      %p103 = por %p101, %p102
      %p104 = scmp.ne.s32.totalorder %s90, %s91
      %p105 = scmp.eq.s32.totalorder %s15, 1
      %p106 = por %p104, %p105
      %p108 = scmp.ne.s32.totalorder %s91, %s107
      %p109 = scmp.eq.s32.totalorder %s15, 0
      %p110 = por %p108, %p109
      %p111 = scmp.le.s32.totalorder 1, %s9
      %p112 = scmp.lt.s32.totalorder %s9, 3
      %p113 = pnand %p111, %p112
      %p114 = pneg %p113
      // Predicated region
      $region9: #{tpu_custom_call.1} parent=5 // pred_check
        _
      $region10: #{tpu_custom_call.1} parent=5 // pred_check_branch
        %116 = sbr.rel (%p113) target = $region12
      $region11: #{tpu_custom_call.1} parent=5 // pred_region
        %s117 = ssub.s32 %s9, 1
        // Predicated region
        $region13: #{tpu_custom_call.1} parent=11 // pred_check
          %p118 = pneg %p56
        $region14: #{tpu_custom_call.1} parent=11 // pred_check_branch
          %120 = sbr.rel (%p118) target = $region16
        $region15: #{tpu_custom_call.1} parent=11 // pred_region
          _
        $region16: #{tpu_custom_call.1} parent=11 // pred_fallthru
          _
        // Predicated region
        $region17: #{tpu_custom_call.1} parent=11 // pred_check
          %p121 = pneg %p77
        $region18: #{tpu_custom_call.1} parent=11 // pred_check_branch
          %123 = sbr.rel (%p121) target = $region20
        $region19: #{tpu_custom_call.1} parent=11 // pred_region
          _
        $region20: #{tpu_custom_call.1} parent=11 // pred_fallthru
          _
      $region12: #{tpu_custom_call.1} parent=5 // pred_fallthru
        _
      %p124 = scmp.lt.s32.totalorder %s9, 2
      // Predicated region
      $region21: #{tpu_custom_call.1} parent=5 // pred_check
        %p125 = pneg %p124
      $region22: #{tpu_custom_call.1} parent=5 // pred_check_branch
        %127 = sbr.rel (%p125) target = $region24
      $region23: #{tpu_custom_call.1} parent=5 // pred_region
        // Predicated region
        $region25: #{tpu_custom_call.1} parent=23 // pred_check
          %p128 = pneg %p29
        $region26: #{tpu_custom_call.1} parent=23 // pred_check_branch
          %130 = sbr.rel (%p128) target = $region28
        $region27: #{tpu_custom_call.1} parent=23 // pred_region
          %s131 = smul.u32 16, %s9
          %s132 = ssub.s32 25, %s131
          %p133 = scmp.lt.s32.totalorder %s132, 16
          %s134 = scalar_select %p133, %s132, 16
          %s135 = smul.u32 128, %s134
          %p136 = scmp.lt.s32.totalorder %s131, 24
          %s137 = scalar_select %p136, %s131, 24
          %s138 = smul.addr %s137, 8
          %s139 = scalar_lea.vmem %s0, %s138
          %s140 = smul.u32 16, %s9
          %s141 = ssub.s32 25, %s140
          %p142 = scmp.lt.s32.totalorder %s141, 16
          %s143 = scalar_select %p142, %s141, 16
          %s144 = smul.u32 128, %s143
        $region28: #{tpu_custom_call.1} parent=23 // pred_fallthru
          _
      $region24: #{tpu_custom_call.1} parent=5 // pred_fallthru
        _
      %p145 = scmp.le.s32.totalorder 1, %s9
      %p146 = scmp.lt.s32.totalorder %s9, 3
      %p147 = pnand %p145, %p146
      %p148 = pneg %p147
      // Predicated region
      $region29: #{tpu_custom_call.1} parent=5 // pred_check
        _
      $region30: #{tpu_custom_call.1} parent=5 // pred_check_branch
        %150 = sbr.rel (%p147) target = $region32
      $region31: #{tpu_custom_call.1} parent=5 // pred_region
        %s151 = ssub.s32 %s9, 1
        %s152 = smul.u32 16, %s14
        %s153 = ssub.s32 25, %s152
        %p154 = scmp.lt.s32.totalorder %s153, 16
        %s155 = scalar_select %p154, %s153, 16
        %s156 = smul.u32 128, %s155
        %p157 = scmp.lt.s32.totalorder %s152, 24
        %s158 = scalar_select %p157, %s152, 24
        %s159 = smul.addr %s158, 8
        %s160 = scalar_lea.vmem %s0, %s159
        %p161 = pneg %p35
        %p162 = pneg %p32
        %p163 = pneg %p56
        %p164 = pneg %p53
        %p165 = pneg %p77
        %p166 = pneg %p74
        %p167 = pneg %p103
        %p168 = pneg %p100
        %s169 = sand.u32 %s90, 1
        %s170 = sand.u32 %s90, 1
        %s171 = smul.addr %s170, 128
        %s172 = scalar_lea.vmem [#allocation2], %s171
        %s173 = smul.u32 16, %s14
        %s174 = ssub.s32 25, %s173
        %p175 = scmp.lt.s32.totalorder %s174, 16
        %s176 = scalar_select %p175, %s174, 16
        %s177 = smul.u32 128, %s176
        %p178 = scmp.lt.s32.totalorder %s173, 24
        %s179 = scalar_select %p178, %s173, 24
        %s180 = smul.addr %s179, 8
        %s181 = scalar_lea.vmem %s0, %s180
        %s182 = smul.u32 16, %s14
        %s183 = ssub.s32 25, %s182
        %p184 = scmp.lt.s32.totalorder %s183, 16
        %s185 = scalar_select %p184, %s183, 16
        %s186 = smul.u32 128, %s185
        %s187 = smul.u32 16, %s14
        %s188 = ssub.s32 25, %s187
        %p189 = scmp.lt.s32.totalorder %s188, 16
        %s190 = scalar_select %p189, %s188, 16
        %s191 = smul.u32 128, %s190
        %v192 = vld [vmem:[%s181] sm:$0xff]
        %v193 = vld [vmem:[%s181 + $0x8] sm:$0xff]
        %v194 = vld [vmem:[%s181 + $0x10] sm:$0xff]
        %v195 = vld [vmem:[%s181 + $0x18] sm:$0xff]
        %v196 = vld [vmem:[%s181 + $0x20] sm:$0xff]
        %v197 = vld [vmem:[%s181 + $0x28] sm:$0xff]
        %v198 = vld [vmem:[%s181 + $0x30] sm:$0xff]
        %v199 = vld [vmem:[%s181 + $0x38] sm:$0xff]
        %v200 = vld [vmem:[%s181 + $0x40] sm:$0xff]
        %v201 = vld [vmem:[%s181 + $0x48] sm:$0xff]
        %v202 = vld [vmem:[%s181 + $0x50] sm:$0xff]
        %v203 = vld [vmem:[%s181 + $0x58] sm:$0xff]
        %v204 = vld [vmem:[%s181 + $0x60] sm:$0xff]
        %v205 = vld [vmem:[%s181 + $0x68] sm:$0xff]
        %v206 = vld [vmem:[%s181 + $0x70] sm:$0xff]
        %v207 = vld [vmem:[%s181 + $0x78] sm:$0xff]
        %v208 = vld [vmem:[%s1] sm:$0x3f]
        %v209 = vld [vmem:[%s2] sm:$0x1]
        %v211 = vlaneseq
        %v212 = vshrl.u32 %v211, 7
        %v213 = vsub.s32 0, %v212
        %v214 = vrot.slane %v209, %v213
        %vm216 = vcmask 48128
        %v218 = vsel %vm216, %v192, 0
        %v221 = vsel %vm216, %v193, 0
        %v224 = vsel %vm216, %v194, 0
        %v227 = vsel %vm216, %v195, 0
        %v230 = vsel %vm216, %v196, 0
        %v233 = vsel %vm216, %v197, 0
        %v236 = vsel %vm216, %v198, 0
        %v239 = vsel %vm216, %v199, 0
        %v242 = vsel %vm216, %v200, 0
        %v245 = vsel %vm216, %v201, 0
        %v248 = vsel %vm216, %v202, 0
        %v251 = vsel %vm216, %v203, 0
        %v254 = vsel %vm216, %v204, 0
        %v257 = vsel %vm216, %v205, 0
        %v260 = vsel %vm216, %v206, 0
        %v263 = vsel %vm216, %v207, 0
        %vm265 = vcmask 1045504
        %v267 = vsel %vm265, %v208, 0
        %269 = vmatprep.subr.mxu0 0.0
        %270 = vmatpush1.msra.mxu0 0.0
        %271 = vmatprep.subr.mxu0 0.0
        %272 = vmatpush1.msra.mxu0 0.0
        %273 = vmatprep.subr.mxu0 0.0
        %274 = vmatpush1.msra.mxu0 0.0
        %275 = vmatprep.subr.mxu0 0.0
        %276 = vmatpush1.msra.mxu0 0.0
        %277 = vmatprep.subr.mxu0 0.0
        %278 = vmatpush1.msra.mxu0 0.0
        %279 = vmatprep.subr.mxu0 0.0
        %280 = vmatpush1.msra.mxu0 0.0
        %281 = vmatprep.subr.mxu0 0.0
        %282 = vmatpush1.msra.mxu0 0.0
        %283 = vmatprep.subr.mxu0 0.0
        %284 = vmatpush1.msra.mxu0 0.0
        %285 = vmatprep.subr.mxu0 0.0
        %286 = vmatpush1.msra.mxu0 0.0
        %287 = vmatprep.subr.mxu0 0.0
        %288 = vmatpush1.msra.mxu0 0.0
        %289 = vmatprep.subr.mxu0 0.0
        %290 = vmatpush1.msra.mxu0 0.0
        %291 = vmatprep.subr.mxu0 0.0
        %292 = vmatpush1.msra.mxu0 0.0
        %293 = vmatprep.subr.mxu0 0.0
        %294 = vmatpush1.msra.mxu0 0.0
        %295 = vmatprep.subr.mxu0 0.0
        %296 = vmatpush1.msra.mxu0 0.0
        %297 = vmatprep.subr.mxu0 0.0
        %298 = vmatpush1.msra.mxu0 0.0
        %299 = vmatprep.subr.mxu0 0.0
        %300 = vmatpush1.msra.mxu0 %v267
        %301 = vmatprep.subr.mxu0 0.0
        %302 = vmatpush2.msra.mxu0 0.0
        %303 = vmatprep.subr.mxu0 0.0
        %304 = vmatpush2.msra.mxu0 0.0
        %305 = vmatprep.subr.mxu0 0.0
        %306 = vmatpush2.msra.mxu0 0.0
        %307 = vmatprep.subr.mxu0 0.0
        %308 = vmatpush2.msra.mxu0 0.0
        %309 = vmatprep.subr.mxu0 0.0
        %310 = vmatpush2.msra.mxu0 0.0
        %311 = vmatprep.subr.mxu0 0.0
        %312 = vmatpush2.msra.mxu0 0.0
        %313 = vmatprep.subr.mxu0 0.0
        %314 = vmatpush2.msra.mxu0 0.0
        %315 = vmatprep.subr.mxu0 0.0
        %316 = vmatpush2.msra.mxu0 0.0
        %317 = vmatprep.subr.mxu0 0.0
        %318 = vmatpush2.msra.mxu0 0.0
        %319 = vmatprep.subr.mxu0 0.0
        %320 = vmatpush2.msra.mxu0 0.0
        %321 = vmatprep.subr.mxu0 0.0
        %322 = vmatpush2.msra.mxu0 0.0
        %323 = vmatprep.subr.mxu0 0.0
        %324 = vmatpush2.msra.mxu0 0.0
        %325 = vmatprep.subr.mxu0 0.0
        %326 = vmatpush2.msra.mxu0 0.0
        %327 = vmatprep.subr.mxu0 0.0
        %328 = vmatpush2.msra.mxu0 0.0
        %329 = vmatprep.subr.mxu0 0.0
        %330 = vmatpush2.msra.mxu0 0.0
        %331 = vmatprep.subr.mxu0 0.0
        %332 = vmatpush2.msra.mxu0 0.0
        %333 = vmatprep.mubr.f32.mxu0 0.0
        %334 = vmatmul.mubr.f32.gmra.mxu0 %v218
        %v335 = vpop.f32.mrf.mxu0
        %v336 = vadd.f32 %v214, %v335
        %v337 = vpop.f32.mrf.mxu0
        %338 = vmatprep.mubr.f32.mxu0 0.0
        %339 = vmatmul.mubr.f32.gmra.mxu0 %v221
        %v340 = vpop.f32.mrf.mxu0
        %v341 = vadd.f32 %v214, %v340
        %v342 = vpop.f32.mrf.mxu0
        %343 = vmatprep.mubr.f32.mxu0 0.0
        %344 = vmatmul.mubr.f32.gmra.mxu0 %v224
        %v345 = vpop.f32.mrf.mxu0
        %v346 = vadd.f32 %v214, %v345
        %v347 = vpop.f32.mrf.mxu0
        %348 = vmatprep.mubr.f32.mxu0 0.0
        %349 = vmatmul.mubr.f32.gmra.mxu0 %v227
        %v350 = vpop.f32.mrf.mxu0
        %v351 = vadd.f32 %v214, %v350
        %v352 = vpop.f32.mrf.mxu0
        %353 = vmatprep.mubr.f32.mxu0 0.0
        %354 = vmatmul.mubr.f32.gmra.mxu0 %v230
        %v355 = vpop.f32.mrf.mxu0
        %v356 = vadd.f32 %v214, %v355
        %v357 = vpop.f32.mrf.mxu0
        %358 = vmatprep.mubr.f32.mxu0 0.0
        %359 = vmatmul.mubr.f32.gmra.mxu0 %v233
        %v360 = vpop.f32.mrf.mxu0
        %v361 = vadd.f32 %v214, %v360
        %v362 = vpop.f32.mrf.mxu0
        %363 = vmatprep.mubr.f32.mxu0 0.0
        %364 = vmatmul.mubr.f32.gmra.mxu0 %v236
        %v365 = vpop.f32.mrf.mxu0
        %v366 = vadd.f32 %v214, %v365
        %v367 = vpop.f32.mrf.mxu0
        %368 = vmatprep.mubr.f32.mxu0 0.0
        %369 = vmatmul.mubr.f32.gmra.mxu0 %v239
        %v370 = vpop.f32.mrf.mxu0
        %v371 = vadd.f32 %v214, %v370
        %v372 = vpop.f32.mrf.mxu0
        %373 = vmatprep.mubr.f32.mxu0 0.0
        %374 = vmatmul.mubr.f32.gmra.mxu0 %v242
        %v375 = vpop.f32.mrf.mxu0
        %v376 = vadd.f32 %v214, %v375
        %v377 = vpop.f32.mrf.mxu0
        %378 = vmatprep.mubr.f32.mxu0 0.0
        %379 = vmatmul.mubr.f32.gmra.mxu0 %v245
        %v380 = vpop.f32.mrf.mxu0
        %v381 = vadd.f32 %v214, %v380
        %v382 = vpop.f32.mrf.mxu0
        %383 = vmatprep.mubr.f32.mxu0 0.0
        %384 = vmatmul.mubr.f32.gmra.mxu0 %v248
        %v385 = vpop.f32.mrf.mxu0
        %v386 = vadd.f32 %v214, %v385
        %v387 = vpop.f32.mrf.mxu0
        %388 = vmatprep.mubr.f32.mxu0 0.0
        %389 = vmatmul.mubr.f32.gmra.mxu0 %v251
        %v390 = vpop.f32.mrf.mxu0
        %v391 = vadd.f32 %v214, %v390
        %v392 = vpop.f32.mrf.mxu0
        %393 = vmatprep.mubr.f32.mxu0 0.0
        %394 = vmatmul.mubr.f32.gmra.mxu0 %v254
        %v395 = vpop.f32.mrf.mxu0
        %v396 = vadd.f32 %v214, %v395
        %v397 = vpop.f32.mrf.mxu0
        %398 = vmatprep.mubr.f32.mxu0 0.0
        %399 = vmatmul.mubr.f32.gmra.mxu0 %v257
        %v400 = vpop.f32.mrf.mxu0
        %v401 = vadd.f32 %v214, %v400
        %v402 = vpop.f32.mrf.mxu0
        %403 = vmatprep.mubr.f32.mxu0 0.0
        %404 = vmatmul.mubr.f32.gmra.mxu0 %v260
        %v405 = vpop.f32.mrf.mxu0
        %v406 = vadd.f32 %v214, %v405
        %v407 = vpop.f32.mrf.mxu0
        %408 = vmatprep.mubr.f32.mxu0 0.0
        %409 = vmatmul.mubr.f32.gmra.mxu0 %v263
        %v410 = vpop.f32.mrf.mxu0
        %v411 = vadd.f32 %v214, %v410
        %v412 = vpop.f32.mrf.mxu0
        %413 = vdwg.mxu0
        %v414 = vxor.u32 %v336, 2147483648
        %v415 = vxor.u32 %v341, 2147483648
        %v416 = vxor.u32 %v346, 2147483648
        %v417 = vxor.u32 %v351, 2147483648
        %v418 = vxor.u32 %v356, 2147483648
        %v419 = vxor.u32 %v361, 2147483648
        %v420 = vxor.u32 %v366, 2147483648
        %v421 = vxor.u32 %v371, 2147483648
        %v422 = vxor.u32 %v376, 2147483648
        %v423 = vxor.u32 %v381, 2147483648
        %v424 = vxor.u32 %v386, 2147483648
        %v425 = vxor.u32 %v391, 2147483648
        %v426 = vxor.u32 %v396, 2147483648
        %v427 = vxor.u32 %v401, 2147483648
        %v428 = vxor.u32 %v406, 2147483648
        %v429 = vxor.u32 %v411, 2147483648
        %v430 = vmul.f32 %v414, 1.442695
        %v431 = vpow.pop %v430
        %v432 = vmul.f32 %v415, 1.442695
        %v433 = vpow.pop %v432
        %v434 = vmul.f32 %v416, 1.442695
        %v435 = vpow.pop %v434
        %v436 = vmul.f32 %v417, 1.442695
        %v437 = vpow.pop %v436
        %v438 = vmul.f32 %v418, 1.442695
        %v439 = vpow.pop %v438
        %v440 = vmul.f32 %v419, 1.442695
        %v441 = vpow.pop %v440
        %v442 = vmul.f32 %v420, 1.442695
        %v443 = vpow.pop %v442
        %v444 = vmul.f32 %v421, 1.442695
        %v445 = vpow.pop %v444
        %v446 = vmul.f32 %v422, 1.442695
        %v447 = vpow.pop %v446
        %v448 = vmul.f32 %v423, 1.442695
        %v449 = vpow.pop %v448
        %v450 = vmul.f32 %v424, 1.442695
        %v451 = vpow.pop %v450
        %v452 = vmul.f32 %v425, 1.442695
        %v453 = vpow.pop %v452
        %v454 = vmul.f32 %v426, 1.442695
        %v455 = vpow.pop %v454
        %v456 = vmul.f32 %v427, 1.442695
        %v457 = vpow.pop %v456
        %v458 = vmul.f32 %v428, 1.442695
        %v459 = vpow.pop %v458
        %v460 = vmul.f32 %v429, 1.442695
        %v461 = vpow.pop %v460
        %v462 = vadd.f32 %v431, 1.0
        %v463 = vadd.f32 %v433, 1.0
        %v464 = vadd.f32 %v435, 1.0
        %v465 = vadd.f32 %v437, 1.0
        %v466 = vadd.f32 %v439, 1.0
        %v467 = vadd.f32 %v441, 1.0
        %v468 = vadd.f32 %v443, 1.0
        %v469 = vadd.f32 %v445, 1.0
        %v470 = vadd.f32 %v447, 1.0
        %v471 = vadd.f32 %v449, 1.0
        %v472 = vadd.f32 %v451, 1.0
        %v473 = vadd.f32 %v453, 1.0
        %v474 = vadd.f32 %v455, 1.0
        %v475 = vadd.f32 %v457, 1.0
        %v476 = vadd.f32 %v459, 1.0
        %v477 = vadd.f32 %v461, 1.0
        %v478 = vrcp.pop %v462
        %v479 = vmul.f32 1.0, %v478
        %v480 = vrcp.pop %v463
        %v481 = vmul.f32 1.0, %v480
        %v482 = vrcp.pop %v464
        %v483 = vmul.f32 1.0, %v482
        %v484 = vrcp.pop %v465
        %v485 = vmul.f32 1.0, %v484
        %v486 = vrcp.pop %v466
        %v487 = vmul.f32 1.0, %v486
        %v488 = vrcp.pop %v467
        %v489 = vmul.f32 1.0, %v488
        %v490 = vrcp.pop %v468
        %v491 = vmul.f32 1.0, %v490
        %v492 = vrcp.pop %v469
        %v493 = vmul.f32 1.0, %v492
        %v494 = vrcp.pop %v470
        %v495 = vmul.f32 1.0, %v494
        %v496 = vrcp.pop %v471
        %v497 = vmul.f32 1.0, %v496
        %v498 = vrcp.pop %v472
        %v499 = vmul.f32 1.0, %v498
        %v500 = vrcp.pop %v473
        %v501 = vmul.f32 1.0, %v500
        %v502 = vrcp.pop %v474
        %v503 = vmul.f32 1.0, %v502
        %v504 = vrcp.pop %v475
        %v505 = vmul.f32 1.0, %v504
        %v506 = vrcp.pop %v476
        %v507 = vmul.f32 1.0, %v506
        %v508 = vrcp.pop %v477
        %v509 = vmul.f32 1.0, %v508
        %vm510 = vcmask 15360
        %511 = vst.msk [vmem:[%s172] sm:$0xff] %vm510, %v479
        %512 = vst.msk [vmem:[%s172 + $0x8] sm:$0xff] %vm510, %v481
        %513 = vst.msk [vmem:[%s172 + $0x10] sm:$0xff] %vm510, %v483
        %514 = vst.msk [vmem:[%s172 + $0x18] sm:$0xff] %vm510, %v485
        %515 = vst.msk [vmem:[%s172 + $0x20] sm:$0xff] %vm510, %v487
        %516 = vst.msk [vmem:[%s172 + $0x28] sm:$0xff] %vm510, %v489
        %517 = vst.msk [vmem:[%s172 + $0x30] sm:$0xff] %vm510, %v491
        %518 = vst.msk [vmem:[%s172 + $0x38] sm:$0xff] %vm510, %v493
        %519 = vst.msk [vmem:[%s172 + $0x40] sm:$0xff] %vm510, %v495
        %520 = vst.msk [vmem:[%s172 + $0x48] sm:$0xff] %vm510, %v497
        %521 = vst.msk [vmem:[%s172 + $0x50] sm:$0xff] %vm510, %v499
        %522 = vst.msk [vmem:[%s172 + $0x58] sm:$0xff] %vm510, %v501
        %523 = vst.msk [vmem:[%s172 + $0x60] sm:$0xff] %vm510, %v503
        %524 = vst.msk [vmem:[%s172 + $0x68] sm:$0xff] %vm510, %v505
        %525 = vst.msk [vmem:[%s172 + $0x70] sm:$0xff] %vm510, %v507
        %526 = vst.msk [vmem:[%s172 + $0x78] sm:$0xff] %vm510, %v509
        %s527 = sand.u32 %s90, 1
        %s528 = sand.u32 %s90, 1
        %s529 = smul.addr %s528, 128
        %s530 = scalar_lea.vmem [#allocation2], %s529
        // Predicated region
        $region33: #{tpu_custom_call.1} parent=31 // pred_check
          %p531 = pneg %p100
        $region34: #{tpu_custom_call.1} parent=31 // pred_check_branch
          %533 = sbr.rel (%p531) target = $region36
        $region35: #{tpu_custom_call.1} parent=31 // pred_region
          %s534 = smul.u32 16, %s14
          %s535 = ssub.s32 25, %s534
          %p536 = scmp.lt.s32.totalorder %s535, 16
          %s537 = scalar_select %p536, %s535, 16
          %s538 = smul.u32 128, %s537
          %p539 = scmp.ne.s32.totalorder 0, %s538
          %s540 = smul.addr %s534, 8
          %s541 = scalar_lea.vmem %s3, %s540
          // Predicated region
          $region37: #{tpu_custom_call.1} parent=35 // pred_check
            %p542 = pneg %p539
          $region38: #{tpu_custom_call.1} parent=35 // pred_check_branch
            %544 = sbr.rel (%p542) target = $region40
          $region39: #{tpu_custom_call.1} parent=35 // pred_region
            // Predicated region
            $region41: #{tpu_custom_call.1} parent=39 // pred_check
              _
            $region42: #{tpu_custom_call.1} parent=39 // pred_check_branch
              %546 = sbr.rel (0) target = $region44
            $region43: #{tpu_custom_call.1} parent=39 // pred_region
              // Predicated region
              $region63: #{tpu_custom_call.1} parent=43 // pred_check
                _
              $region64: #{tpu_custom_call.1} parent=43 // pred_check_branch
                %626 = sbr.rel (0) target = $region66
              $region65: #{tpu_custom_call.1} parent=43 // pred_region
                %s627 = sshrl.u32 %s537, 4
                // While loop
                $region67: #{tpu_custom_call.1} parent=65 // loop_pre_header
                  _
                $region68: #{tpu_custom_call.1} parent=65 // loop_header
                  %s629 = sphi 0, %s631
                  %p630 = scmp.ge.s32.totalorder %s629, %s627
                  %s634 = sphi 0, %s671
                  %s635 = sphi %s530, %s674
                  %s636 = sphi %s541, %s675
                $region69: #{tpu_custom_call.1} parent=65 // loop_header_branch
                  %633 = sbr.rel (%p630) target = $region73
                $region70: #{tpu_custom_call.1} parent=65 // loop_body
                  %v637 = vld [vmem:[%s635] sm:$0xff]
                  %638 = vst [vmem:[%s636] sm:$0xff] %v637
                  %v639 = vld [vmem:[%s635 + $0x8] sm:$0xff]
                  %640 = vst [vmem:[%s636 + $0x8] sm:$0xff] %v639
                  %v641 = vld [vmem:[%s635 + $0x10] sm:$0xff]
                  %642 = vst [vmem:[%s636 + $0x10] sm:$0xff] %v641
                  %v643 = vld [vmem:[%s635 + $0x18] sm:$0xff]
                  %644 = vst [vmem:[%s636 + $0x18] sm:$0xff] %v643
                  %v645 = vld [vmem:[%s635 + $0x20] sm:$0xff]
                  %646 = vst [vmem:[%s636 + $0x20] sm:$0xff] %v645
                  %v647 = vld [vmem:[%s635 + $0x28] sm:$0xff]
                  %648 = vst [vmem:[%s636 + $0x28] sm:$0xff] %v647
                  %v649 = vld [vmem:[%s635 + $0x30] sm:$0xff]
                  %650 = vst [vmem:[%s636 + $0x30] sm:$0xff] %v649
                  %v651 = vld [vmem:[%s635 + $0x38] sm:$0xff]
                  %652 = vst [vmem:[%s636 + $0x38] sm:$0xff] %v651
                  %v653 = vld [vmem:[%s635 + $0x40] sm:$0xff]
                  %654 = vst [vmem:[%s636 + $0x40] sm:$0xff] %v653
                  %v655 = vld [vmem:[%s635 + $0x48] sm:$0xff]
                  %656 = vst [vmem:[%s636 + $0x48] sm:$0xff] %v655
                  %v657 = vld [vmem:[%s635 + $0x50] sm:$0xff]
                  %658 = vst [vmem:[%s636 + $0x50] sm:$0xff] %v657
                  %v659 = vld [vmem:[%s635 + $0x58] sm:$0xff]
                  %660 = vst [vmem:[%s636 + $0x58] sm:$0xff] %v659
                  %v661 = vld [vmem:[%s635 + $0x60] sm:$0xff]
                  %662 = vst [vmem:[%s636 + $0x60] sm:$0xff] %v661
                  %v663 = vld [vmem:[%s635 + $0x68] sm:$0xff]
                  %664 = vst [vmem:[%s636 + $0x68] sm:$0xff] %v663
                  %v665 = vld [vmem:[%s635 + $0x70] sm:$0xff]
                  %666 = vst [vmem:[%s636 + $0x70] sm:$0xff] %v665
                  %v667 = vld [vmem:[%s635 + $0x78] sm:$0xff]
                  %668 = vst [vmem:[%s636 + $0x78] sm:$0xff] %v667
                  %s669 = sadd.s32 1, %s634
                  %p670 = scmp.ge.s32.totalorder %s669, %s627
                  %s671 = scalar_select %p670, 0, %s669
                  %s672 = smul.u32 %s671, 128
                  %s673 = smul.u32 %s671, 128
                  %s674 = scalar_lea.vmem %s530, %s672 [#allocation2]
                  %s675 = scalar_lea.vmem %s541, %s673
                $region71: #{tpu_custom_call.1} parent=65 // loop_footer
                  %s631 = sadd.s32 %s629, 1
                $region72: #{tpu_custom_call.1} parent=65 // loop_footer_branch
                  %628 = sbr.rel target = $region68
                $region73: #{tpu_custom_call.1} parent=65 // loop_exit
                  _
                %s676 = sshrl.u32 %s537, 4
                %s677 = sand.u32 %s537, 15
                %s678 = smul.u32 %s676, 16
                %s679 = smul.u32 8, %s678
                %s680 = scalar_lea.vmem %s530, %s679 [#allocation2]
                %s681 = smul.u32 8, %s678
                %s682 = scalar_lea.vmem %s541, %s681
                // While loop
                $region74: #{tpu_custom_call.1} parent=65 // loop_pre_header
                  _
                $region75: #{tpu_custom_call.1} parent=65 // loop_header
                  %s684 = sphi 0, %s686
                  %p685 = scmp.ge.s32.totalorder %s684, %s677
                  %s689 = sphi 0, %s696
                  %s690 = sphi %s680, %s699
                  %s691 = sphi %s682, %s700
                $region76: #{tpu_custom_call.1} parent=65 // loop_header_branch
                  %688 = sbr.rel (%p685) target = $region80
                $region77: #{tpu_custom_call.1} parent=65 // loop_body
                  %v692 = vld [vmem:[%s690] sm:$0xff]
                  %693 = vst [vmem:[%s691] sm:$0xff] %v692
                  %s694 = sadd.s32 1, %s689
                  %p695 = scmp.ge.s32.totalorder %s694, %s677
                  %s696 = scalar_select %p695, 0, %s694
                  %s697 = smul.u32 %s696, 8
                  %s698 = smul.u32 %s696, 8
                  %s699 = scalar_lea.vmem %s680, %s697 [#allocation2]
                  %s700 = scalar_lea.vmem %s682, %s698
                $region78: #{tpu_custom_call.1} parent=65 // loop_footer
                  %s686 = sadd.s32 %s684, 1
                $region79: #{tpu_custom_call.1} parent=65 // loop_footer_branch
                  %683 = sbr.rel target = $region75
                $region80: #{tpu_custom_call.1} parent=65 // loop_exit
                  _
              $region66: #{tpu_custom_call.1} parent=43 // pred_fallthru
                _
              // Predicated region
              $region81: #{tpu_custom_call.1} parent=43 // pred_check
                _
              $region82: #{tpu_custom_call.1} parent=43 // pred_check_branch
                %702 = sbr.rel target = $region84
              $region83: #{tpu_custom_call.1} parent=43 // pred_region
                _
              $region84: #{tpu_custom_call.1} parent=43 // pred_fallthru
                _
            $region44: #{tpu_custom_call.1} parent=39 // pred_fallthru
              _
            // Predicated region
            $region45: #{tpu_custom_call.1} parent=39 // pred_check
              _
            $region46: #{tpu_custom_call.1} parent=39 // pred_check_branch
              %548 = sbr.rel target = $region48
            $region47: #{tpu_custom_call.1} parent=39 // pred_region
              %s550 = ssub.s32 256, 1
              %s551 = sshrl.u32 %s537, 4
              // While loop
              $region49: #{tpu_custom_call.1} parent=47 // loop_pre_header
                _
              $region50: #{tpu_custom_call.1} parent=47 // loop_header
                %s553 = sphi 0, %s555
                %p554 = scmp.ge.s32.totalorder %s553, %s551
                %s558 = sphi 0, %s595
                %s559 = sphi %s530, %s598
                %s560 = sphi %s541, %s599
              $region51: #{tpu_custom_call.1} parent=47 // loop_header_branch
                %557 = sbr.rel (%p554) target = $region55
              $region52: #{tpu_custom_call.1} parent=47 // loop_body
                %v561 = vld [vmem:[%s559] sm:%s550]
                %562 = vst [vmem:[%s560] sm:%s550] %v561
                %v563 = vld [vmem:[%s559 + $0x8] sm:%s550]
                %564 = vst [vmem:[%s560 + $0x8] sm:%s550] %v563
                %v565 = vld [vmem:[%s559 + $0x10] sm:%s550]
                %566 = vst [vmem:[%s560 + $0x10] sm:%s550] %v565
                %v567 = vld [vmem:[%s559 + $0x18] sm:%s550]
                %568 = vst [vmem:[%s560 + $0x18] sm:%s550] %v567
                %v569 = vld [vmem:[%s559 + $0x20] sm:%s550]
                %570 = vst [vmem:[%s560 + $0x20] sm:%s550] %v569
                %v571 = vld [vmem:[%s559 + $0x28] sm:%s550]
                %572 = vst [vmem:[%s560 + $0x28] sm:%s550] %v571
                %v573 = vld [vmem:[%s559 + $0x30] sm:%s550]
                %574 = vst [vmem:[%s560 + $0x30] sm:%s550] %v573
                %v575 = vld [vmem:[%s559 + $0x38] sm:%s550]
                %576 = vst [vmem:[%s560 + $0x38] sm:%s550] %v575
                %v577 = vld [vmem:[%s559 + $0x40] sm:%s550]
                %578 = vst [vmem:[%s560 + $0x40] sm:%s550] %v577
                %v579 = vld [vmem:[%s559 + $0x48] sm:%s550]
                %580 = vst [vmem:[%s560 + $0x48] sm:%s550] %v579
                %v581 = vld [vmem:[%s559 + $0x50] sm:%s550]
                %582 = vst [vmem:[%s560 + $0x50] sm:%s550] %v581
                %v583 = vld [vmem:[%s559 + $0x58] sm:%s550]
                %584 = vst [vmem:[%s560 + $0x58] sm:%s550] %v583
                %v585 = vld [vmem:[%s559 + $0x60] sm:%s550]
                %586 = vst [vmem:[%s560 + $0x60] sm:%s550] %v585
                %v587 = vld [vmem:[%s559 + $0x68] sm:%s550]
                %588 = vst [vmem:[%s560 + $0x68] sm:%s550] %v587
                %v589 = vld [vmem:[%s559 + $0x70] sm:%s550]
                %590 = vst [vmem:[%s560 + $0x70] sm:%s550] %v589
                %v591 = vld [vmem:[%s559 + $0x78] sm:%s550]
                %592 = vst [vmem:[%s560 + $0x78] sm:%s550] %v591
                %s593 = sadd.s32 1, %s558
                %p594 = scmp.ge.s32.totalorder %s593, %s551
                %s595 = scalar_select %p594, 0, %s593
                %s596 = smul.u32 %s595, 128
                %s597 = smul.u32 %s595, 128
                %s598 = scalar_lea.vmem %s530, %s596 [#allocation2]
                %s599 = scalar_lea.vmem %s541, %s597
              $region53: #{tpu_custom_call.1} parent=47 // loop_footer
                %s555 = sadd.s32 %s553, 1
              $region54: #{tpu_custom_call.1} parent=47 // loop_footer_branch
                %552 = sbr.rel target = $region50
              $region55: #{tpu_custom_call.1} parent=47 // loop_exit
                _
              %s600 = sshrl.u32 %s537, 4
              %s601 = sand.u32 %s537, 15
              %s602 = smul.u32 %s600, 16
              %s603 = smul.u32 8, %s602
              %s604 = scalar_lea.vmem %s530, %s603 [#allocation2]
              %s605 = smul.u32 8, %s602
              %s606 = scalar_lea.vmem %s541, %s605
              // While loop
              $region56: #{tpu_custom_call.1} parent=47 // loop_pre_header
                _
              $region57: #{tpu_custom_call.1} parent=47 // loop_header
                %s608 = sphi 0, %s610
                %p609 = scmp.ge.s32.totalorder %s608, %s601
                %s613 = sphi 0, %s620
                %s614 = sphi %s604, %s623
                %s615 = sphi %s606, %s624
              $region58: #{tpu_custom_call.1} parent=47 // loop_header_branch
                %612 = sbr.rel (%p609) target = $region62
              $region59: #{tpu_custom_call.1} parent=47 // loop_body
                %v616 = vld [vmem:[%s614] sm:%s550]
                %617 = vst [vmem:[%s615] sm:%s550] %v616
                %s618 = sadd.s32 1, %s613
                %p619 = scmp.ge.s32.totalorder %s618, %s601
                %s620 = scalar_select %p619, 0, %s618
                %s621 = smul.u32 %s620, 8
                %s622 = smul.u32 %s620, 8
                %s623 = scalar_lea.vmem %s604, %s621 [#allocation2]
                %s624 = scalar_lea.vmem %s606, %s622
              $region60: #{tpu_custom_call.1} parent=47 // loop_footer
                %s610 = sadd.s32 %s608, 1
              $region61: #{tpu_custom_call.1} parent=47 // loop_footer_branch
                %607 = sbr.rel target = $region57
              $region62: #{tpu_custom_call.1} parent=47 // loop_exit
                _
            $region48: #{tpu_custom_call.1} parent=39 // pred_fallthru
              _
          $region40: #{tpu_custom_call.1} parent=35 // pred_fallthru
            _
          %703 = vnop
        $region36: #{tpu_custom_call.1} parent=31 // pred_fallthru
          _
      $region32: #{tpu_custom_call.1} parent=5 // pred_fallthru
        _
      %p704 = scmp.le.s32.totalorder 2, %s9
      // Predicated region
      $region85: #{tpu_custom_call.1} parent=5 // pred_check
        %p705 = pneg %p704
      $region86: #{tpu_custom_call.1} parent=5 // pred_check_branch
        %707 = sbr.rel (%p705) target = $region88
      $region87: #{tpu_custom_call.1} parent=5 // pred_region
        %s708 = ssub.s32 %s9, 2
        // Predicated region
        $region89: #{tpu_custom_call.1} parent=87 // pred_check
          %p709 = pneg %p106
        $region90: #{tpu_custom_call.1} parent=87 // pred_check_branch
          %711 = sbr.rel (%p709) target = $region92
        $region91: #{tpu_custom_call.1} parent=87 // pred_region
          %s712 = sand.u32 %s91, 1
          %s713 = sand.u32 %s91, 1
          %s714 = smul.addr %s713, 128
          %s715 = scalar_lea.vmem [#allocation2], %s714
        $region92: #{tpu_custom_call.1} parent=87 // pred_fallthru
          _
      $region88: #{tpu_custom_call.1} parent=5 // pred_fallthru
        _
    $region6: #{tpu_custom_call.1} parent=1 // loop_footer
      %s13 = sadd.s32 1, %s9
    $region7: #{tpu_custom_call.1} parent=1 // loop_footer_branch
      %8 = sbr.rel target = $region3
    $region8: #{tpu_custom_call.1} parent=1 // loop_exit
      _

</llo_original>
